<compile_context>
chip_gen: v7x
topology: tpu7x:2x2x1
jax: 0.10.0
libtpu: 0.0.40
codegen_flags: <defaults>
</compile_context>

<pallas_src>
import functools

import jax
import jax.numpy as jnp
from jax.experimental import pallas as pl
from jax.experimental.pallas import tpu as pltpu


def _round_up(x, m):
    return ((x + m - 1) // m) * m


def _pick_chunk(ts):
    """Largest sub-chunk (<=64 sublanes) that divides the seq tile."""
    if ts <= 64:
        return ts
    for cand in (64, 56, 48, 40, 32, 24, 16, 8):
        if ts % cand == 0:
            return cand
    return ts


def _captum_submodel_kernel(last_ref, x_ref, len_ref, w_ref, b_ref, o_ref,
                            acc_ref, *, seq_len, chunk):
    """One (batch-tile, seq-tile) grid step.

    last_ref: (nbt,)      int32 SMEM (scalar prefetch): last seq tile needed per batch tile
    x_ref:    (TB, TS, H) embeddings tile (any float dtype, cast in-kernel per chunk)
    len_ref:  (TB, 128)   int32 lengths, lane-broadcast
    w_ref:    (H, Cp)     f32 classifier weight (constant block -> fetched once)
    b_ref:    (1, Cp)     f32 classifier bias   (constant block -> fetched once)
    o_ref:    (TB, Cp)    f32 output tile (resident across the seq axis)
    acc_ref:  (TB, H)     f32 masked-sum accumulator (VMEM scratch)
    """
    bi = pl.program_id(0)
    si = pl.program_id(1)
    n_s = pl.num_programs(1)
    tb, ts, _ = x_ref.shape
    n_chunks = ts // chunk

    @pl.when(si == 0)
    def _init():
        acc_ref[...] = jnp.zeros_like(acc_ref)

    lens = len_ref[:, 0:1]                                    # (TB, 1) int32
    # Clamp mask length to S: matches the reference (mask = arange(S) < length)
    # and keeps garbage in partial edge seq blocks out of the accumulator.
    mask_len = jnp.minimum(lens, seq_len)[:, :, None]         # (TB, 1, 1)

    @pl.when(si <= last_ref[bi])                              # skip tiles past every length
    def _accumulate():
        def chunk_body(c, carry):
            start = pl.multiple_of(c * chunk, chunk)
            xc = x_ref[:, pl.ds(start, chunk), :].astype(jnp.float32)  # (TB, chunk, H)
            # Broadcast-ready mask layout: sublane iota, lane splat on compare.
            pos = (jax.lax.broadcasted_iota(jnp.int32, (tb, chunk, 1), 1)
                   + si * ts + start)                          # (TB, chunk, 1)
            # where-select (not mask-multiply): garbage padding never poisons acc.
            acc_ref[...] += jnp.sum(jnp.where(pos < mask_len, xc, 0.0), axis=1)
            return carry

        jax.lax.fori_loop(0, n_chunks, chunk_body, 0)

    @pl.when(si == n_s - 1)
    def _finalize():
        # Guard zero / padded-row lengths; divisor is the raw length (reference).
        inv_len = pl.reciprocal(
            jnp.maximum(lens.astype(jnp.float32), 1.0), approx=False)
        # (acc @ W) * inv_len : scale C_pad columns instead of H columns.
        pred = jnp.dot(acc_ref[...], w_ref[...],
                       preferred_element_type=jnp.float32)
        o_ref[...] = (pred * inv_len + b_ref[...]).astype(o_ref.dtype)


def captum_submodel_forward(word_embeddings, lengths, weight, bias,
                            *, tb=None, ts=None, chunk=None,
                            vmem_limit_bytes=None):
    """pred = _CaptumSubModel(model)(word_embeddings, lengths)

    word_embeddings: (B, S, H) float (f32 or bf16; bf16 halves HBM traffic)
    lengths:         (B,)      int   (assumed <= S, as in the reference model)
    weight:          (H, C)    float
    bias:            (C,)      float
    returns pred:    (B, C)    float32
    """
    B, S, H = word_embeddings.shape
    C = weight.shape[1]
    elem = jnp.dtype(word_embeddings.dtype).itemsize

    # ---- per-generation VMEM plan (v7x: 64 MiB/TC; v5e/v6e: 128 MiB) ----
    try:
        cap = int(pltpu.get_tpu_info().vmem_capacity_bytes)
    except Exception:  # pragma: no cover - conservative fallback
        cap = 64 * 1024 * 1024
    if cap <= 96 * 1024 * 1024:          # 64 MiB-class core (v7x)
        per_buffer = 7 * 1024 * 1024
        default_limit = 56 * 1024 * 1024
    else:                                 # 128 MiB-class core (v5e / v6e)
        per_buffer = 20 * 1024 * 1024
        default_limit = 100 * 1024 * 1024
    if vmem_limit_bytes is None:
        vmem_limit_bytes = default_limit

    # ---- batch tile: as big as possible (MXU fill, fewer grid steps) while
    #      keeping >= 2 batch tiles when the batch allows it (v7x megacore) and
    #      leaving room for at least an 8-row seq slab in the VMEM budget.
    B8 = _round_up(B, 8)
    if tb is None:
        tb = 8
        for cand in (128, 64, 32, 16, 8):
            if cand > B8:
                continue
            if B8 > 8 and -(-B8 // cand) < 2:     # want >= 2 batch tiles
                continue
            if cand * 8 * H * elem > per_buffer:  # must fit an 8-row seq slab
                continue
            tb = cand
            break
    B_pad = _round_up(B, tb)
    nbt = B_pad // tb

    # ---- seq tile: fill the per-buffer budget; prefer a divisor of S so the
    #      edge block is full, otherwise the partial edge block is masked.
    if ts is None:
        cap_rows = max(8, (per_buffer // max(1, tb * H * elem)) // 8 * 8)
        if S <= cap_rows:
            ts = S
        else:
            ts = cap_rows
            for d in range(cap_rows, max(8, cap_rows // 2) - 1, -8):
                if S % d == 0:
                    ts = d
                    break
    ts = int(min(ts, S))
    n_st = pl.cdiv(S, ts)

    if chunk is None:
        chunk = _pick_chunk(ts)
    chunk = int(min(chunk, ts))
    if ts % chunk != 0:
        chunk = ts

    # ---- small padded operands (the big embeddings array is NOT copied) ----
    lengths_i32 = lengths.astype(jnp.int32)
    len_pad = jnp.zeros((B_pad,), jnp.int32).at[:B].set(lengths_i32)
    len2d = jnp.broadcast_to(len_pad[:, None], (B_pad, 128))

    # Scalar prefetch: last seq tile containing any valid token, per batch tile.
    max_per_tile = jnp.max(len_pad.reshape(nbt, tb), axis=1)
    last_tile = jnp.clip(
        (jnp.minimum(max_per_tile, S) + ts - 1) // ts - 1, 0, n_st - 1
    ).astype(jnp.int32)

    C_pad = _round_up(C, 128)   # lane-dense output / MXU N dim
    w_p = jnp.zeros((H, C_pad), jnp.float32).at[:, :C].set(weight.astype(jnp.float32))
    b_p = jnp.zeros((1, C_pad), jnp.float32).at[0, :C].set(bias.astype(jnp.float32))

    kernel = functools.partial(_captum_submodel_kernel, seq_len=S, chunk=chunk)

    out = pl.pallas_call(
        kernel,
        out_shape=jax.ShapeDtypeStruct((B_pad, C_pad), jnp.float32),
        grid_spec=pltpu.PrefetchScalarGridSpec(
            num_scalar_prefetch=1,
            grid=(nbt, n_st),
            in_specs=[
                # embeddings streamed in place; seq index clamped so tiles past
                # the longest sequence in the batch tile re-use the last block
                # (DMA skipped).
                pl.BlockSpec((tb, ts, H),
                             lambda bi, si, last: (bi, jnp.minimum(si, last[bi]), 0)),
                pl.BlockSpec((tb, 128), lambda bi, si, last: (bi, 0)),   # lengths
                pl.BlockSpec((H, C_pad), lambda bi, si, last: (0, 0)),   # W (resident)
                pl.BlockSpec((1, C_pad), lambda bi, si, last: (0, 0)),   # b (resident)
            ],
            out_specs=pl.BlockSpec((tb, C_pad), lambda bi, si, last: (bi, 0)),
            scratch_shapes=[pltpu.VMEM((tb, H), jnp.float32)],
        ),
        compiler_params=pltpu.CompilerParams(
            dimension_semantics=("parallel", "arbitrary"),
            vmem_limit_bytes=vmem_limit_bytes,
        ),
    )(last_tile, word_embeddings, len2d, w_p, b_p)

    return out[:B, :C]


def _reference(word_embeddings, lengths, weight, bias):
    B, S, H = word_embeddings.shape
    mask = (jnp.arange(S)[None, :] < lengths[:, None]).astype(jnp.float32)
    pooled = jnp.sum(word_embeddings.astype(jnp.float32) * mask[:, :, None], axis=1)
    pooled = pooled / jnp.maximum(lengths[:, None].astype(jnp.float32), 1.0)
    return pooled @ weight.astype(jnp.float32) + bias[None, :].astype(jnp.float32)


if __name__ == "__main__":
    key = jax.random.PRNGKey(0)
    k_x, k_w, k_b, k_x2, k_l2 = jax.random.split(key, 5)

    # --- Test 1: small canonical shapes (single seq tile, partial batch block) ---
    B, S, H, C = 2, 8, 32, 8
    word_embeddings = jax.random.normal(k_x, (B, S, H), dtype=jnp.float32)
    lengths = jnp.array([8, 5], dtype=jnp.int32)
    weight = jax.random.normal(k_w, (H, C), dtype=jnp.float32) * 0.1
    bias = jax.random.normal(k_b, (C,), dtype=jnp.float32) * 0.01

    pred = jax.block_until_ready(
        captum_submodel_forward(word_embeddings, lengths, weight, bias))
    ref = _reference(word_embeddings, lengths, weight, bias)
    assert pred.shape == (B, C)
    assert jnp.allclose(pred, ref, atol=1e-5, rtol=1e-5)

    # --- Test 2: multi batch-tile + multi seq-tile grid, partial edge seq block,
    #             chunked reduction and DMA-skip for short sequences ---
    B2, S2 = 10, 40
    x2 = jax.random.normal(k_x2, (B2, S2, H), dtype=jnp.float32)
    lens2 = jax.random.randint(k_l2, (B2,), 1, S2 + 1, dtype=jnp.int32)
    pred2 = jax.block_until_ready(
        captum_submodel_forward(x2, lens2, weight, bias, ts=16, chunk=8))
    ref2 = _reference(x2, lens2, weight, bias)
    assert pred2.shape == (B2, C)
    assert jnp.allclose(pred2, ref2, atol=1e-5, rtol=1e-5)

    # --- Test 3: bf16 embeddings on the wire (in-kernel cast path) ---
    x3 = x2.astype(jnp.bfloat16)
    pred3 = jax.block_until_ready(
        captum_submodel_forward(x3, lens2, weight, bias, ts=16))
    ref3 = _reference(x3, lens2, weight, bias)
    assert jnp.allclose(pred3, ref3, atol=2e-2, rtol=2e-2)

    print("KERNEL_OK")
</pallas_src>

<mosaic_0001>
module attributes {stable_mosaic.version = 11 : i64} {
  func.func @_captum_submodel_kernel(%arg0: i32, %arg1: i32, %arg2: memref<1xi32, #tpu.memory_space<smem>>, %arg3: memref<8x8x32xf32, #tpu.memory_space<vmem>>, %arg4: memref<8x128xi32, #tpu.memory_space<vmem>>, %arg5: memref<32x128xf32, #tpu.memory_space<vmem>>, %arg6: memref<1x128xf32, #tpu.memory_space<vmem>>, %arg7: memref<8x128xf32, #tpu.memory_space<vmem>>, %arg8: memref<8x32xf32, #tpu.memory_space<vmem>>) attributes {dimension_semantics = [#tpu.dimension_semantics<parallel>, #tpu.dimension_semantics<arbitrary>], iteration_bounds = array<i64: 1, 1>, scalar_prefetch = 1 : i64, scratch_operands = 1 : i64, tpu.core_type = #tpu.core_type<tc>, window_params = [{transform_indices = @transform_0, window_bounds = array<i64: 8, 8, 32>}, {transform_indices = @transform_1, window_bounds = array<i64: 8, 128>}, {pipeline_mode = #tpu.pipeline_mode<synchronous>, transform_indices = @transform_2, window_bounds = array<i64: 32, 128>}, {pipeline_mode = #tpu.pipeline_mode<synchronous>, transform_indices = @transform_3, window_bounds = array<i64: 1, 128>}, {transform_indices = @transform_4, window_bounds = array<i64: 8, 128>}]} {
    %c0_i32 = arith.constant 0 : i32
    %0 = arith.cmpi eq, %arg1, %c0_i32 : i32
    %1 = arith.extui %0 : i1 to i32
    %c0_i32_0 = arith.constant 0 : i32
    %2 = arith.cmpi ne, %1, %c0_i32_0 : i32
    scf.if %2 {
      %cst = arith.constant 0.000000e+00 : f32
      %15 = vector.broadcast %cst : f32 to vector<8x32xf32>
      %c0_5 = arith.constant 0 : index
      %c0_6 = arith.constant 0 : index
      %16 = vector.load %arg8[%c0_5, %c0_6] : memref<8x32xf32, #tpu.memory_space<vmem>>, vector<8x32xf32>
      tpu.vector_store %arg8[%c0_5, %c0_6], %15 {strides = array<i32>} : memref<8x32xf32, #tpu.memory_space<vmem>>, vector<8x32xf32>,
    } else {
    }
    %c0 = arith.constant 0 : index
    %c0_1 = arith.constant 0 : index
    %3 = vector.load %arg4[%c0, %c0_1] : memref<8x128xi32, #tpu.memory_space<vmem>>, vector<8x1xi32>
    %c8_i32 = arith.constant 8 : i32
    %4 = vector.broadcast %c8_i32 : i32 to vector<8x1xi32>
    %5 = arith.minsi %3, %4 : vector<8x1xi32>
    %6 = vector.shape_cast %5 : vector<8x1xi32> to vector<8x1x1xi32>
    %7 = arith.index_cast %arg0 : i32 to index
    %8 = memref.load %arg2[%7] : memref<1xi32, #tpu.memory_space<smem>>
    %9 = arith.cmpi sle, %arg1, %8 : i32
    %10 = arith.extui %9 : i1 to i32
    %c0_i32_2 = arith.constant 0 : i32
    %11 = arith.cmpi ne, %10, %c0_i32_2 : i32
    scf.if %11 {
      %c0_i32_5 = arith.constant 0 : i32
      %c8_i32_6 = arith.constant 8 : i32
      %15 = arith.muli %c0_i32_5, %c8_i32_6 : i32
      %16 = tpu.assume_multiple %15, 8 : i32
      %c0_7 = arith.constant 0 : index
      %17 = arith.index_cast %16 : i32 to index
      %c0_8 = arith.constant 0 : index
      %18 = vector.load %arg3[%c0_7, %17, %c0_8] : memref<8x8x32xf32, #tpu.memory_space<vmem>>, vector<8x8x32xf32>
      %19 = tpu.iota {dimensions = array<i32: 1>} : vector<8x8x1xi32>
      %c8_i32_9 = arith.constant 8 : i32
      %20 = arith.muli %arg1, %c8_i32_9 : i32
      %21 = vector.broadcast %20 : i32 to vector<8x8x1xi32>
      %22 = arith.addi %19, %21 : vector<8x8x1xi32>
      %23 = vector.broadcast %16 : i32 to vector<8x8x1xi32>
      %24 = arith.addi %22, %23 : vector<8x8x1xi32>
      %c0_10 = arith.constant 0 : index
      %c0_11 = arith.constant 0 : index
      %25 = vector.load %arg8[%c0_10, %c0_11] : memref<8x32xf32, #tpu.memory_space<vmem>>, vector<8x32xf32>
      %26 = vector.broadcast %6 : vector<8x1x1xi32> to vector<8x8x1xi32>
      %27 = arith.cmpi slt, %24, %26 : vector<8x8x1xi32>
      %cst = arith.constant 0.000000e+00 : f32
      %28 = vector.shape_cast %27 : vector<8x8x1xi1> to vector<8x8x1xi1>
      %29 = vector.broadcast %28 : vector<8x8x1xi1> to vector<8x8x32xi1>
      %30 = vector.broadcast %cst : f32 to vector<8x8x32xf32>
      %31 = arith.select %29, %18, %30 : vector<8x8x32xi1>, vector<8x8x32xf32>
      %cst_12 = arith.constant dense<0.000000e+00> : vector<8x32xf32>
      %32 = vector.multi_reduction <add>, %31, %cst_12 [1] : vector<8x8x32xf32> to vector<8x32xf32>
      %33 = arith.addf %25, %32 : vector<8x32xf32>
      %c0_13 = arith.constant 0 : index
      %c0_14 = arith.constant 0 : index
      %34 = vector.load %arg8[%c0_13, %c0_14] : memref<8x32xf32, #tpu.memory_space<vmem>>, vector<8x32xf32>
      tpu.vector_store %arg8[%c0_13, %c0_14], %33 {strides = array<i32>} : memref<8x32xf32, #tpu.memory_space<vmem>>, vector<8x32xf32>,
      %c1_i32 = arith.constant 1 : i32
    } else {
    }
    %c0_i32_3 = arith.constant 0 : i32
    %12 = arith.cmpi eq, %arg1, %c0_i32_3 : i32
    %13 = arith.extui %12 : i1 to i32
    %c0_i32_4 = arith.constant 0 : i32
    %14 = arith.cmpi ne, %13, %c0_i32_4 : i32
    scf.if %14 {
      %15 = arith.sitofp %3 : vector<8x1xi32> to vector<8x1xf32>
      %cst = arith.constant 1.000000e+00 : f32
      %16 = vector.broadcast %cst : f32 to vector<8x1xf32>
      %17 = arith.maximumf %15, %16 : vector<8x1xf32>
      %18 = tpu.reciprocal %17 : vector<8x1xf32> -> vector<8x1xf32>
      %c0_5 = arith.constant 0 : index
      %c0_6 = arith.constant 0 : index
      %19 = vector.load %arg8[%c0_5, %c0_6] : memref<8x32xf32, #tpu.memory_space<vmem>>, vector<8x32xf32>
      %c0_7 = arith.constant 0 : index
      %c0_8 = arith.constant 0 : index
      %20 = vector.load %arg5[%c0_7, %c0_8] : memref<32x128xf32, #tpu.memory_space<vmem>>, vector<32x128xf32>
      %cst_9 = arith.constant dense<0.000000e+00> : vector<8x128xf32>
      %21 = tpu.matmul %19, %20, %cst_9 {dimension_numbers = #tpu.dot_dimension_numbers<[1], [0], [0], [1], [0, 0, 1, 1], [], []>} : vector<8x32xf32>, vector<32x128xf32>, vector<8x128xf32> -> vector<8x128xf32>
      %22 = vector.broadcast %18 : vector<8x1xf32> to vector<8x128xf32>
      %23 = arith.mulf %21, %22 : vector<8x128xf32>
      %c0_10 = arith.constant 0 : index
      %c0_11 = arith.constant 0 : index
      %24 = vector.load %arg6[%c0_10, %c0_11] : memref<1x128xf32, #tpu.memory_space<vmem>>, vector<1x128xf32>
      %25 = vector.broadcast %24 : vector<1x128xf32> to vector<8x128xf32>
      %26 = arith.addf %23, %25 : vector<8x128xf32>
      %c0_12 = arith.constant 0 : index
      %c0_13 = arith.constant 0 : index
      %27 = vector.load %arg7[%c0_12, %c0_13] : memref<8x128xf32, #tpu.memory_space<vmem>>, vector<8x128xf32>
      tpu.vector_store %arg7[%c0_12, %c0_13], %26 {strides = array<i32>} : memref<8x128xf32, #tpu.memory_space<vmem>>, vector<8x128xf32>,
    } else {
    }
    return
  }
  func.func @transform_0(%arg0: i32, %arg1: i32, %arg2: memref<1xi32, #tpu.memory_space<smem>>) -> (i32, i32, i32) {
    %0 = arith.index_cast %arg0 : i32 to index
    %1 = memref.load %arg2[%0] : memref<1xi32, #tpu.memory_space<smem>>
    %2 = arith.minsi %arg1, %1 : i32
    %c0_i32 = arith.constant 0 : i32
    %c0_i32_0 = arith.constant 0 : i32
    return %arg0, %2, %c0_i32 : i32, i32, i32
  }
  func.func @transform_1(%arg0: i32, %arg1: i32, %arg2: memref<1xi32, #tpu.memory_space<smem>>) -> (i32, i32) {
    %c0_i32 = arith.constant 0 : i32
    %c0_i32_0 = arith.constant 0 : i32
    return %arg0, %c0_i32 : i32, i32
  }
  func.func @transform_2(%arg0: i32, %arg1: i32, %arg2: memref<1xi32, #tpu.memory_space<smem>>) -> (i32, i32) {
    %c0_i32 = arith.constant 0 : i32
    %c0_i32_0 = arith.constant 0 : i32
    %c0_i32_1 = arith.constant 0 : i32
    return %c0_i32, %c0_i32_0 : i32, i32
  }
  func.func @transform_3(%arg0: i32, %arg1: i32, %arg2: memref<1xi32, #tpu.memory_space<smem>>) -> (i32, i32) {
    %c0_i32 = arith.constant 0 : i32
    %c0_i32_0 = arith.constant 0 : i32
    %c0_i32_1 = arith.constant 0 : i32
    return %c0_i32, %c0_i32_0 : i32, i32
  }
  func.func @transform_4(%arg0: i32, %arg1: i32, %arg2: memref<1xi32, #tpu.memory_space<smem>>) -> (i32, i32) {
    %c0_i32 = arith.constant 0 : i32
    %c0_i32_0 = arith.constant 0 : i32
    return %arg0, %c0_i32 : i32, i32
  }
}

</mosaic_0001>

<llo_original>
// kernel: tpu_custom_call.1
$region0: #{tpu_custom_call.1}
  #allocation0 [shape = 'u32[]', space=smem, size = 0x4, offset = 0x4, fixed_abs, tag = 'smem constant byte address 0x4 - core index']
  #allocation1 [shape = 'u32[144,128]{1,0:T(1,128)}', space=vmem, size = 0x12000, scoped, tag = 'internal scratch']
  #allocation2 [shape = 'f32[8,32]{1,0:T(8,128)}', space=vmem, size = 0x1000, scoped, tag = 'scratch operand']
  #allocation3 [shape = 's32[1]{0}', space=sflag, size = 0x4, scoped, tag = 'scoped memory for tpu_custom_call.1']
  #allocation4 [shape = 's32[1]{0:T(128)S(6)}', space=smem, size = 0x200, scoped, tag = 'prefetched SMEM operand 0']
  %s0 = inlined_call_operand.<no memory space> [shape: s32[1], index: 0, kind: input, shape index: {}]
  %s1 = inlined_call_operand.hbm [shape: f32[2,8,32], index: 1, kind: input, shape index: {}]
  %s2 = inlined_call_operand.hbm [shape: s32[8,128], index: 2, kind: input, shape index: {}]
  %s3 = inlined_call_operand.hbm [shape: f32[32,128], index: 3, kind: input, shape index: {}]
  %s4 = inlined_call_operand.vmem [shape: f32[1,128], index: 4, kind: input, shape index: {}]
  %s5 = inlined_call_operand.hbm [shape: f32[8,128], index: 5, kind: output, shape index: {}]
  %s6 = sld [smem:[#allocation0]]
  $region50: #{tpu_custom_call.1} parent=0
    _
  %s8 = ssub.s32 1, %s6
  %s9 = scalar_select 0, %s8, %s6
  %10 = sst [smem:[#allocation4]] %s0
  $region1: #{tpu_custom_call.1} parent=0
    #allocation5 [shape = 'u8[32768]{0}', space=vmem, size = 0x8000, scoped, tag = 'input window, operand 1, single buffered']
    #allocation6 [shape = 's32[1]{0}', space=sflag, size = 0x4, scoped, tag = 'scoped memory for tpu_custom_call.1']
    #allocation7 [shape = 's32[1]{0}', space=sflag, size = 0x4, scoped, tag = 'scoped memory for tpu_custom_call.1']
    #allocation8 [shape = 'u8[4096]{0}', space=vmem, size = 0x1000, scoped, tag = 'input window, operand 2, single buffered']
    #allocation9 [shape = 's32[1]{0}', space=sflag, size = 0x4, scoped, tag = 'scoped memory for tpu_custom_call.1']
    #allocation10 [shape = 'u8[16384]{0}', space=vmem, size = 0x4000, scoped, tag = 'input window, operand 3, single buffered']
    #allocation11 [shape = 'u8[4096]{0}', space=vmem, size = 0x1000, scoped, tag = 'output window, operand 0, single buffered']
    %11 = vsyncpa [#allocation6], 0
    %12 = vsyncpa [#allocation9], 0
    %13 = vsyncpa [#allocation7], 0
    // Predicated region
    $region2: #{tpu_custom_call.1} parent=1 // pred_check
      _
    $region3: #{tpu_custom_call.1} parent=1 // pred_check_branch
      %15 = sbr.rel (0) target = $region5
    $region4: #{tpu_custom_call.1} parent=1 // pred_region
      %s16 = sld [smem:[#allocation4]]
      %p17 = scmp.lt.s32.totalorder 0, %s16
      %s18 = scalar_select %p17, 0, %s16
      %s20 = ssub.s32 1024, 256
      %21 = vsyncadd [#allocation6], %s20
      %s22 = smul.addr %s18, 128
      %s23 = scalar_lea.hbm %s1, %s22
      %s24 = sshll.u32 [#allocation5], 4
      %s25 = int_to_ptr.vmem [resolvable:$true] %s24
      %30 = dma.hbm_to_vmem [thread:$0]  %s23, 256, %s25, [#allocation6], 128, 128, 8
    $region5: #{tpu_custom_call.1} parent=1 // pred_fallthru
      _
    // Predicated region
    $region6: #{tpu_custom_call.1} parent=1 // pred_check
      _
    $region7: #{tpu_custom_call.1} parent=1 // pred_check_branch
      %32 = sbr.rel (0) target = $region9
    $region8: #{tpu_custom_call.1} parent=1 // pred_region
      %s34 = ssub.s32 128, 128
      %35 = vsyncadd [#allocation9], %s34
      %s37 = sshll.u32 [#allocation8], 4
      %s38 = int_to_ptr.vmem [resolvable:$true] %s37
      %40 = dma.hbm_to_vmem [thread:$0]  %s2, 128, %s38, [#allocation9]
    $region9: #{tpu_custom_call.1} parent=1 // pred_fallthru
      _
    // Predicated region
    $region10: #{tpu_custom_call.1} parent=1 // pred_check
      _
    $region11: #{tpu_custom_call.1} parent=1 // pred_check_branch
      %42 = sbr.rel (0) target = $region13
    $region12: #{tpu_custom_call.1} parent=1 // pred_region
      %s44 = ssub.s32 512, 512
      %45 = vsyncadd [#allocation9], %s44
      %s46 = sshll.u32 [#allocation10], 4
      %s47 = int_to_ptr.vmem [resolvable:$true] %s46
      %52 = dma.hbm_to_vmem [thread:$0]  %s3, 512, %s47, [#allocation9], 128, 128, 8
    $region13: #{tpu_custom_call.1} parent=1 // pred_fallthru
      _
    // Predicated region
    $region14: #{tpu_custom_call.1} parent=1 // pred_check
      _
    $region15: #{tpu_custom_call.1} parent=1 // pred_check_branch
      %54 = sbr.rel (0) target = $region17
    $region16: #{tpu_custom_call.1} parent=1 // pred_region
      _
    $region17: #{tpu_custom_call.1} parent=1 // pred_fallthru
      _
    // Predicated region
    $region18: #{tpu_custom_call.1} parent=1 // pred_check
      _
    $region19: #{tpu_custom_call.1} parent=1 // pred_check_branch
      %56 = sbr.rel (0) target = $region21
    $region20: #{tpu_custom_call.1} parent=1 // pred_region
      %57 = dma.done [#allocation6], 1024
    $region21: #{tpu_custom_call.1} parent=1 // pred_fallthru
      _
    // Predicated region
    $region22: #{tpu_custom_call.1} parent=1 // pred_check
      _
    $region23: #{tpu_custom_call.1} parent=1 // pred_check_branch
      %59 = sbr.rel (0) target = $region25
    $region24: #{tpu_custom_call.1} parent=1 // pred_region
      %60 = dma.done [#allocation9], 128
    $region25: #{tpu_custom_call.1} parent=1 // pred_fallthru
      _
    // Predicated region
    $region26: #{tpu_custom_call.1} parent=1 // pred_check
      _
    $region27: #{tpu_custom_call.1} parent=1 // pred_check_branch
      %62 = sbr.rel (0) target = $region29
    $region28: #{tpu_custom_call.1} parent=1 // pred_region
      %63 = dma.done [#allocation9], 512
    $region29: #{tpu_custom_call.1} parent=1 // pred_fallthru
      _
    %s64 = sld [smem:[#allocation4]]
    %p65 = scmp.lt.s32.totalorder 0, %s64
    %s66 = scalar_select %p65, 0, %s64
    %p67 = scmp.eq.s32.totalorder 0, 0
    // Predicated region
    $region30: #{tpu_custom_call.1} parent=1 // pred_check
      %p68 = pneg %p67
    $region31: #{tpu_custom_call.1} parent=1 // pred_check_branch
      %70 = sbr.rel (%p68) target = $region33
    $region32: #{tpu_custom_call.1} parent=1 // pred_region
      %vm71 = vcmask 261120
      %72 = vst.msk [vmem:[#allocation2] sm:$0xff] %vm71, 0.0
    $region33: #{tpu_custom_call.1} parent=1 // pred_fallthru
      _
    %v73 = vld [vmem:[#allocation8] sm:$0xff]
    %vm74 = vcmp.lt.s32.totalorder %v73, 8
    %v75 = vsel %vm74, %v73, 8
    %v76 = vcombine.high %v75, %v75
    %v78 = vunpack.c.l.s4 1966171168
    %v79 = vunpack.c.0.s8 %v78
    %v80 = vlaneseq
    %v81 = vshrl.u32 %v80, 7
    %v82 = vsub.s32 %v79, %v81
    %v83 = vrot.slane %v75, %v82
    %v85 = vunpack.c.l.s4 1966171168
    %v86 = vunpack.c.0.s8 %v85
    %v87 = vlaneseq
    %v88 = vshrl.u32 %v87, 7
    %v89 = vsub.s32 %v86, %v88
    %v90 = vrot.slane %v76, %v89
    %v91 = vcombine.high %v83, %v83
    %v92 = vcombine.high %v90, %v90
    %v94 = vunpack.c.l.s4 1966171168
    %v95 = vunpack.c.0.s8 %v94
    %v96 = vlaneseq
    %v97 = vshrl.u32 %v96, 7
    %v98 = vsub.s32 %v95, %v97
    %v99 = vrot.slane %v83, %v98
    %v101 = vunpack.c.l.s4 1966171168
    %v102 = vunpack.c.0.s8 %v101
    %v103 = vlaneseq
    %v104 = vshrl.u32 %v103, 7
    %v105 = vsub.s32 %v102, %v104
    %v106 = vrot.slane %v90, %v105
    %v108 = vunpack.c.l.s4 1966171168
    %v109 = vunpack.c.0.s8 %v108
    %v110 = vlaneseq
    %v111 = vshrl.u32 %v110, 7
    %v112 = vsub.s32 %v109, %v111
    %v113 = vrot.slane %v91, %v112
    %v115 = vunpack.c.l.s4 1966171168
    %v116 = vunpack.c.0.s8 %v115
    %v117 = vlaneseq
    %v118 = vshrl.u32 %v117, 7
    %v119 = vsub.s32 %v116, %v118
    %v120 = vrot.slane %v92, %v119
    %v121 = vcombine.high %v99, %v99
    %v122 = vcombine.high %v106, %v106
    %v123 = vcombine.high %v113, %v113
    %v124 = vcombine.high %v120, %v120
    %s125 = sld [smem:[#allocation4]]
    %p126 = scmp.le.s32.totalorder 0, %s125
    // Predicated region
    $region34: #{tpu_custom_call.1} parent=1 // pred_check
      %p127 = pneg %p126
    $region35: #{tpu_custom_call.1} parent=1 // pred_check_branch
      %129 = sbr.rel (%p127) target = $region37
    $region36: #{tpu_custom_call.1} parent=1 // pred_region
      %v130 = vld [vmem:[#allocation5] sm:$0xff]
      %v131 = vld [vmem:[#allocation5 + $0x8] sm:$0xff]
      %v132 = vld [vmem:[#allocation5 + $0x10] sm:$0xff]
      %v133 = vld [vmem:[#allocation5 + $0x18] sm:$0xff]
      %v134 = vld [vmem:[#allocation5 + $0x20] sm:$0xff]
      %v135 = vld [vmem:[#allocation5 + $0x28] sm:$0xff]
      %v136 = vld [vmem:[#allocation5 + $0x30] sm:$0xff]
      %v137 = vld [vmem:[#allocation5 + $0x38] sm:$0xff]
      %v138 = vlaneseq
      %v139 = vshrl.u32 %v138, 7
      %s140 = smul.u32 0, 8
      %v141 = vstv %s140
      %v142 = vadd.s32 %v139, %v141
      %v143 = vstv 0
      %v144 = vadd.s32 %v142, %v143
      %v145 = vld [vmem:[#allocation2] sm:$0xff]
      %v146 = vlaneseq
      %v147 = vshrl.u32 %v146, 7
      %v148 = vsub.s32 0, %v147
      %v149 = vrot.slane %v99, %v148
      %v150 = vlaneseq
      %v151 = vshrl.u32 %v150, 7
      %v152 = vsub.s32 0, %v151
      %v153 = vrot.slane %v113, %v152
      %v154 = vlaneseq
      %v155 = vshrl.u32 %v154, 7
      %v156 = vsub.s32 0, %v155
      %v157 = vrot.slane %v121, %v156
      %v158 = vlaneseq
      %v159 = vshrl.u32 %v158, 7
      %v160 = vsub.s32 0, %v159
      %v161 = vrot.slane %v123, %v160
      %v162 = vlaneseq
      %v163 = vshrl.u32 %v162, 7
      %v164 = vsub.s32 0, %v163
      %v165 = vrot.slane %v106, %v164
      %v166 = vlaneseq
      %v167 = vshrl.u32 %v166, 7
      %v168 = vsub.s32 0, %v167
      %v169 = vrot.slane %v120, %v168
      %v170 = vlaneseq
      %v171 = vshrl.u32 %v170, 7
      %v172 = vsub.s32 0, %v171
      %v173 = vrot.slane %v122, %v172
      %v174 = vlaneseq
      %v175 = vshrl.u32 %v174, 7
      %v176 = vsub.s32 0, %v175
      %v177 = vrot.slane %v124, %v176
      %vm178 = vcmp.lt.s32.totalorder %v144, %v149
      %vm179 = vcmp.lt.s32.totalorder %v144, %v153
      %vm180 = vcmp.lt.s32.totalorder %v144, %v157
      %vm181 = vcmp.lt.s32.totalorder %v144, %v161
      %vm182 = vcmp.lt.s32.totalorder %v144, %v165
      %vm183 = vcmp.lt.s32.totalorder %v144, %v169
      %vm184 = vcmp.lt.s32.totalorder %v144, %v173
      %vm185 = vcmp.lt.s32.totalorder %v144, %v177
      %v186 = vsel %vm178, 1, 0
      %v187 = vsel %vm179, 1, 0
      %v188 = vsel %vm180, 1, 0
      %v189 = vsel %vm181, 1, 0
      %v190 = vsel %vm182, 1, 0
      %v191 = vsel %vm183, 1, 0
      %v192 = vsel %vm184, 1, 0
      %v193 = vsel %vm185, 1, 0
      %194 = vset.pattern.permute.xlu0 0
      %195 = vperm.xlu0 %194, %v186
      %v196 = vpop.permute.xlu0 %195
      %197 = vset.pattern.permute.xlu0 0
      %198 = vperm.xlu0 %197, %v187
      %v199 = vpop.permute.xlu0 %198
      %200 = vset.pattern.permute.xlu0 0
      %201 = vperm.xlu0 %200, %v188
      %v202 = vpop.permute.xlu0 %201
      %203 = vset.pattern.permute.xlu0 0
      %204 = vperm.xlu0 %203, %v189
      %v205 = vpop.permute.xlu0 %204
      %206 = vset.pattern.permute.xlu0 0
      %207 = vperm.xlu0 %206, %v190
      %v208 = vpop.permute.xlu0 %207
      %209 = vset.pattern.permute.xlu0 0
      %210 = vperm.xlu0 %209, %v191
      %v211 = vpop.permute.xlu0 %210
      %212 = vset.pattern.permute.xlu0 0
      %213 = vperm.xlu0 %212, %v192
      %v214 = vpop.permute.xlu0 %213
      %215 = vset.pattern.permute.xlu0 0
      %216 = vperm.xlu0 %215, %v193
      %v217 = vpop.permute.xlu0 %216
      %vm218 = vcmp.eq.s32.totalorder %v196, 1
      %vm219 = vcmp.eq.s32.totalorder %v199, 1
      %vm220 = vcmp.eq.s32.totalorder %v202, 1
      %vm221 = vcmp.eq.s32.totalorder %v205, 1
      %vm222 = vcmp.eq.s32.totalorder %v208, 1
      %vm223 = vcmp.eq.s32.totalorder %v211, 1
      %vm224 = vcmp.eq.s32.totalorder %v214, 1
      %vm225 = vcmp.eq.s32.totalorder %v217, 1
      %v226 = vsel %vm218, %v130, 0.0
      %v227 = vsel %vm219, %v131, 0.0
      %v228 = vsel %vm220, %v132, 0.0
      %v229 = vsel %vm221, %v133, 0.0
      %v230 = vsel %vm222, %v134, 0.0
      %v231 = vsel %vm223, %v135, 0.0
      %v232 = vsel %vm224, %v136, 0.0
      %v233 = vsel %vm225, %v137, 0.0
      %vm234 = vcmask 261120
      %v235 = vsel %vm234, %v226, 0.0
      %v236 = vrot.slane %v235, 4
      %v237 = vadd.f32 %v235, %v236
      %v238 = vrot.slane %v237, 2
      %v239 = vadd.f32 %v237, %v238
      %v240 = vrot.slane %v239, 1
      %v241 = vadd.f32 %v239, %v240
      %v242 = vsel %vm234, %v227, 0.0
      %v243 = vrot.slane %v242, 4
      %v244 = vadd.f32 %v242, %v243
      %v245 = vrot.slane %v244, 2
      %v246 = vadd.f32 %v244, %v245
      %v247 = vrot.slane %v246, 1
      %v248 = vadd.f32 %v246, %v247
      %v249 = vsel %vm234, %v228, 0.0
      %v250 = vrot.slane %v249, 4
      %v251 = vadd.f32 %v249, %v250
      %v252 = vrot.slane %v251, 2
      %v253 = vadd.f32 %v251, %v252
      %v254 = vrot.slane %v253, 1
      %v255 = vadd.f32 %v253, %v254
      %v256 = vsel %vm234, %v229, 0.0
      %v257 = vrot.slane %v256, 4
      %v258 = vadd.f32 %v256, %v257
      %v259 = vrot.slane %v258, 2
      %v260 = vadd.f32 %v258, %v259
      %v261 = vrot.slane %v260, 1
      %v262 = vadd.f32 %v260, %v261
      %v263 = vsel %vm234, %v230, 0.0
      %v264 = vrot.slane %v263, 4
      %v265 = vadd.f32 %v263, %v264
      %v266 = vrot.slane %v265, 2
      %v267 = vadd.f32 %v265, %v266
      %v268 = vrot.slane %v267, 1
      %v269 = vadd.f32 %v267, %v268
      %v270 = vsel %vm234, %v231, 0.0
      %v271 = vrot.slane %v270, 4
      %v272 = vadd.f32 %v270, %v271
      %v273 = vrot.slane %v272, 2
      %v274 = vadd.f32 %v272, %v273
      %v275 = vrot.slane %v274, 1
      %v276 = vadd.f32 %v274, %v275
      %v277 = vsel %vm234, %v232, 0.0
      %v278 = vrot.slane %v277, 4
      %v279 = vadd.f32 %v277, %v278
      %v280 = vrot.slane %v279, 2
      %v281 = vadd.f32 %v279, %v280
      %v282 = vrot.slane %v281, 1
      %v283 = vadd.f32 %v281, %v282
      %v284 = vsel %vm234, %v233, 0.0
      %v285 = vrot.slane %v284, 4
      %v286 = vadd.f32 %v284, %v285
      %v287 = vrot.slane %v286, 2
      %v288 = vadd.f32 %v286, %v287
      %v289 = vrot.slane %v288, 1
      %v290 = vadd.f32 %v288, %v289
      %vm299 = vcmask 1041409
      %v300 = vsel %vm299, %v248, %v241
      %vm301 = vcmask 1042434
      %v302 = vsel %vm301, %v255, %v300
      %vm303 = vcmask 1043459
      %v304 = vsel %vm303, %v262, %v302
      %vm305 = vcmask 1044484
      %v306 = vsel %vm305, %v269, %v304
      %vm307 = vcmask 1045509
      %v308 = vsel %vm307, %v276, %v306
      %vm309 = vcmask 1046534
      %v310 = vsel %vm309, %v283, %v308
      %vm311 = vcmask 1047559
      %v312 = vsel %vm311, %v290, %v310
      %v314 = vadd.f32 %v145, %v312
      %315 = vst.msk [vmem:[#allocation2] sm:$0xff] %vm234, %v314
    $region37: #{tpu_custom_call.1} parent=1 // pred_fallthru
      _
    // Predicated region
    $region38: #{tpu_custom_call.1} parent=1 // pred_check
      %p316 = pneg %p67
    $region39: #{tpu_custom_call.1} parent=1 // pred_check_branch
      %318 = sbr.rel (%p316) target = $region41
    $region40: #{tpu_custom_call.1} parent=1 // pred_region
      %v319 = vcvt.s32.f32 %v73
      %v320 = vmax.f32 %v319, 1.0
      %v321 = vrcp.pop %v320
      %v322 = vld [vmem:[#allocation2] sm:$0xff]
      %v323 = vld [vmem:[#allocation10] sm:$0xff]
      %v324 = vld [vmem:[#allocation10 + $0x8] sm:$0xff]
      %v325 = vld [vmem:[#allocation10 + $0x10] sm:$0xff]
      %v326 = vld [vmem:[#allocation10 + $0x18] sm:$0xff]
      %vm327 = vcmask 261120
      %v329 = vsel %vm327, %v322, 0
      %331 = vmatprep.subr.mxu0 0.0
      %332 = vmatpush1.msra.mxu0 %v323
      %333 = vmatprep.subr.mxu0 0.0
      %334 = vmatpush1.msra.mxu0 %v324
      %335 = vmatprep.subr.mxu0 0.0
      %336 = vmatpush1.msra.mxu0 %v325
      %337 = vmatprep.subr.mxu0 0.0
      %338 = vmatpush1.msra.mxu0 %v326
      %339 = vmatprep.subr.mxu0 0.0
      %340 = vmatpush1.msra.mxu0 0.0
      %341 = vmatprep.subr.mxu0 0.0
      %342 = vmatpush1.msra.mxu0 0.0
      %343 = vmatprep.subr.mxu0 0.0
      %344 = vmatpush1.msra.mxu0 0.0
      %345 = vmatprep.subr.mxu0 0.0
      %346 = vmatpush1.msra.mxu0 0.0
      %347 = vmatprep.subr.mxu0 0.0
      %348 = vmatpush1.msra.mxu0 0.0
      %349 = vmatprep.subr.mxu0 0.0
      %350 = vmatpush1.msra.mxu0 0.0
      %351 = vmatprep.subr.mxu0 0.0
      %352 = vmatpush1.msra.mxu0 0.0
      %353 = vmatprep.subr.mxu0 0.0
      %354 = vmatpush1.msra.mxu0 0.0
      %355 = vmatprep.subr.mxu0 0.0
      %356 = vmatpush1.msra.mxu0 0.0
      %357 = vmatprep.subr.mxu0 0.0
      %358 = vmatpush1.msra.mxu0 0.0
      %359 = vmatprep.subr.mxu0 0.0
      %360 = vmatpush1.msra.mxu0 0.0
      %361 = vmatprep.subr.mxu0 0.0
      %362 = vmatpush1.msra.mxu0 0.0
      %363 = vmatprep.subr.mxu0 0.0
      %364 = vmatpush1.msra.mxu0 0.0
      %365 = vmatprep.subr.mxu0 0.0
      %366 = vmatpush1.msra.mxu0 0.0
      %367 = vmatprep.subr.mxu0 0.0
      %368 = vmatpush1.msra.mxu0 0.0
      %369 = vmatprep.subr.mxu0 0.0
      %370 = vmatpush1.msra.mxu0 0.0
      %371 = vmatprep.subr.mxu0 0.0
      %372 = vmatpush1.msra.mxu0 0.0
      %373 = vmatprep.subr.mxu0 0.0
      %374 = vmatpush1.msra.mxu0 0.0
      %375 = vmatprep.subr.mxu0 0.0
      %376 = vmatpush1.msra.mxu0 0.0
      %377 = vmatprep.subr.mxu0 0.0
      %378 = vmatpush1.msra.mxu0 0.0
      %379 = vmatprep.subr.mxu0 0.0
      %380 = vmatpush1.msra.mxu0 0.0
      %381 = vmatprep.subr.mxu0 0.0
      %382 = vmatpush1.msra.mxu0 0.0
      %383 = vmatprep.subr.mxu0 0.0
      %384 = vmatpush1.msra.mxu0 0.0
      %385 = vmatprep.subr.mxu0 0.0
      %386 = vmatpush1.msra.mxu0 0.0
      %387 = vmatprep.subr.mxu0 0.0
      %388 = vmatpush1.msra.mxu0 0.0
      %389 = vmatprep.subr.mxu0 0.0
      %390 = vmatpush1.msra.mxu0 0.0
      %391 = vmatprep.subr.mxu0 0.0
      %392 = vmatpush1.msra.mxu0 0.0
      %393 = vmatprep.subr.mxu0 0.0
      %394 = vmatpush1.msra.mxu0 0.0
      %395 = vmatprep.mubr.f32.mxu0 0.0
      %396 = vmatmul.mubr.f32.gmra.mrb[0].mxu0 %v329
      %v397 = vpop.f32.mrb[0].mxu0
      %v398 = vadd.f32 0.0, %v397
      %v399 = vpop.f32.mrb[0].mxu0
      %400 = vdwg.mxu0
      %402 = vset.pattern.permute.xlu0 0
      %403 = vperm.xlu0 %402, %v321
      %v404 = vpop.permute.xlu0 %403
      %v406 = vmul.f32 %v398, %v404
      %v407 = vld [vmem:[%s4] sm:$0x1]
      %v409 = vlaneseq
      %v410 = vshrl.u32 %v409, 7
      %v411 = vsub.s32 0, %v410
      %v412 = vrot.slane %v407, %v411
      %v414 = vadd.f32 %v406, %v412
      %415 = vst [vmem:[#allocation11] sm:$0xff] %v414
    $region41: #{tpu_custom_call.1} parent=1 // pred_fallthru
      _
    // Predicated region
    $region42: #{tpu_custom_call.1} parent=1 // pred_check
      _
    $region43: #{tpu_custom_call.1} parent=1 // pred_check_branch
      %417 = sbr.rel (0) target = $region45
    $region44: #{tpu_custom_call.1} parent=1 // pred_region
      %s419 = ssub.s32 128, 128
      %420 = vsyncadd [#allocation7], %s419
      %s422 = sshll.u32 [#allocation11], 4
      %s423 = int_to_ptr.vmem [resolvable:$true] %s422
      %425 = dma.vmem_to_hbm [thread:$0]  %s423, 128, %s5, [#allocation7]
    $region45: #{tpu_custom_call.1} parent=1 // pred_fallthru
      _
    // Predicated region
    $region46: #{tpu_custom_call.1} parent=1 // pred_check
      _
    $region47: #{tpu_custom_call.1} parent=1 // pred_check_branch
      %427 = sbr.rel (0) target = $region49
    $region48: #{tpu_custom_call.1} parent=1 // pred_region
      %428 = dma.done [#allocation7], 128
    $region49: #{tpu_custom_call.1} parent=1 // pred_fallthru
      _
    %429 = vsyncpa [#allocation6], 1
    %430 = vsyncpa [#allocation9], 1
    %431 = vsyncpa [#allocation7], 1

</llo_original>
